<compile_context>
chip_gen: v6e
topology: v6e:2x2x1
jax: 0.10.0
libtpu: 0.0.40
codegen_flags: <defaults>
</compile_context>

<pallas_src>
import functools
import math

import jax
import jax.numpy as jnp
from jax import lax
from jax.experimental import pallas as pl
from jax.experimental.pallas import tpu as pltpu


def _round_up(v, m):
    return (v + m - 1) // m * m


def _gelu_tanh_f32(x):
    # tanh-approximate GELU in f32 (EUP tanh instead of a VALU erf polynomial).
    c = math.sqrt(2.0 / math.pi)
    return 0.5 * x * (1.0 + jnp.tanh(c * (x + 0.044715 * (x * x * x))))


# --------------------------------------------------------------------------
# Kernel 1: fused single pass (hidden dim fully resident).
#   grid = (num_row_tiles,)
# --------------------------------------------------------------------------
def _mlp_kernel_fused(x_ref, w1_ref, b1_ref, w2_ref, b2_ref, o_ref):
    h = jnp.dot(x_ref[...], w1_ref[...], preferred_element_type=jnp.float32)
    h = _gelu_tanh_f32(h + b1_ref[...])
    y = jnp.dot(h.astype(w2_ref.dtype), w2_ref[...],
                preferred_element_type=jnp.float32)
    o_ref[...] = (y + b2_ref[...]).astype(o_ref.dtype)


# --------------------------------------------------------------------------
# Kernel 2: streaming over hidden column tiles with an f32 accumulator.
#   grid = (num_row_tiles, num_hidden_tiles), hidden axis "arbitrary".
# --------------------------------------------------------------------------
def _mlp_kernel_stream(x_ref, w1_ref, b1_ref, w2_ref, b2_ref, o_ref, acc_ref):
    k = pl.program_id(1)

    @pl.when(k == 0)
    def _init():
        acc_ref[...] = jnp.zeros_like(acc_ref)

    h = jnp.dot(x_ref[...], w1_ref[...], preferred_element_type=jnp.float32)
    h = _gelu_tanh_f32(h + b1_ref[...])
    acc_ref[...] += jnp.dot(h.astype(w2_ref.dtype), w2_ref[...],
                            preferred_element_type=jnp.float32)

    @pl.when(k == pl.num_programs(1) - 1)
    def _finalize():
        o_ref[...] = (acc_ref[...] + b2_ref[...]).astype(o_ref.dtype)


@functools.partial(jax.jit, static_argnames=("tm", "th"))
def mlp_pallas(x, w1, b1, w2, b2, *, tm=256, th=None):
    """Fused MLP: gelu(x @ w1 + b1) @ w2 + b2   (dropout p=0.0 == identity).

    x:  (B, N, C)   w1: (C, H) = fc1.weight.T   b1: (H,)
                    w2: (H, O) = fc2.weight.T   b2: (O,)
    tm: row (token) tile (sweepable).  th: hidden tile (None = auto-select).
    """
    out_dtype = x.dtype
    B, N, C = x.shape
    Cw, H = w1.shape
    Hw, O = w2.shape
    assert Cw == C and Hw == H and b1.shape == (H,) and b2.shape == (O,)

    M = B * N

    # ---- static tile / padding selection ---------------------------------
    tm_eff = _round_up(min(tm, _round_up(M, 8)), 8)
    M_pad = _round_up(M, tm_eff)

    C_pad = _round_up(C, 128)           # lane-dense loads
    O_pad = _round_up(O, 128)           # lane-dense (unmasked) stores

    if th is None:
        th_eff = H if H <= 2048 else 512   # keep resident when modest
    else:
        th_eff = min(th, H)
    if th_eff < H:
        th_eff = min(_round_up(th_eff, 128), _round_up(H, 128))
    if th_eff >= H:
        th_eff = H
        H_pad = H
    else:
        H_pad = _round_up(H, th_eff)
    single_pass = th_eff >= H           # hidden fully resident

    # ---- cast + zero-pad operands (zero padding is exact for this MLP) ---
    x2 = x.reshape(M, C).astype(jnp.bfloat16)
    if (M_pad, C_pad) != (M, C):
        x2 = jnp.pad(x2, ((0, M_pad - M), (0, C_pad - C)))

    w1p = w1.astype(jnp.bfloat16)
    if (C_pad, H_pad) != (C, H):
        w1p = jnp.pad(w1p, ((0, C_pad - C), (0, H_pad - H)))
    b1p = b1.astype(jnp.float32)
    if H_pad != H:
        b1p = jnp.pad(b1p, (0, H_pad - H))
    b1p = b1p.reshape(1, H_pad)

    w2p = w2.astype(jnp.bfloat16)
    if (H_pad, O_pad) != (H, O):
        w2p = jnp.pad(w2p, ((0, H_pad - H), (0, O_pad - O)))
    b2p = b2.astype(jnp.float32)
    if O_pad != O:
        b2p = jnp.pad(b2p, (0, O_pad - O))
    b2p = b2p.reshape(1, O_pad)

    # ---- explicit scoped-VMEM budget (double-buffered tiles + scratch) ---
    vmem_needed = (
        2 * tm_eff * C_pad * 2          # x tile, bf16
        + 2 * C_pad * th_eff * 2        # W1 tile, bf16
        + 2 * 8 * th_eff * 4            # b1 tile (sublane-padded), f32
        + 2 * th_eff * O_pad * 2        # W2 tile, bf16
        + 2 * 8 * O_pad * 4             # b2 tile, f32
        + 2 * tm_eff * O_pad * 4        # out tile (worst case f32)
        + tm_eff * O_pad * 4            # f32 accumulator scratch
        + tm_eff * th_eff * (4 + 2)     # h in f32 + bf16 copy
    )
    vmem_limit = min(max(int(vmem_needed * 1.5) + (4 << 20), 32 << 20),
                     64 << 20)          # stay within v7x's 64 MiB per TC

    if single_pass:
        grid = (M_pad // tm_eff,)
        out = pl.pallas_call(
            _mlp_kernel_fused,
            out_shape=jax.ShapeDtypeStruct((M_pad, O_pad), out_dtype),
            grid_spec=pltpu.PrefetchScalarGridSpec(
                num_scalar_prefetch=0,
                grid=grid,
                in_specs=[
                    pl.BlockSpec((tm_eff, C_pad), lambda i: (i, 0)),   # x
                    pl.BlockSpec((C_pad, H_pad),  lambda i: (0, 0)),   # W1
                    pl.BlockSpec((1, H_pad),      lambda i: (0, 0)),   # b1
                    pl.BlockSpec((H_pad, O_pad),  lambda i: (0, 0)),   # W2
                    pl.BlockSpec((1, O_pad),      lambda i: (0, 0)),   # b2
                ],
                out_specs=pl.BlockSpec((tm_eff, O_pad), lambda i: (i, 0)),
            ),
            compiler_params=pltpu.CompilerParams(
                dimension_semantics=("parallel",),
                vmem_limit_bytes=vmem_limit,
            ),
        )(x2, w1p, b1p, w2p, b2p)
    else:
        grid = (M_pad // tm_eff, H_pad // th_eff)
        out = pl.pallas_call(
            _mlp_kernel_stream,
            out_shape=jax.ShapeDtypeStruct((M_pad, O_pad), out_dtype),
            grid_spec=pltpu.PrefetchScalarGridSpec(
                num_scalar_prefetch=0,
                grid=grid,
                in_specs=[
                    pl.BlockSpec((tm_eff, C_pad), lambda i, k: (i, 0)),   # x
                    pl.BlockSpec((C_pad, th_eff), lambda i, k: (0, k)),   # W1
                    pl.BlockSpec((1, th_eff),     lambda i, k: (0, k)),   # b1
                    pl.BlockSpec((th_eff, O_pad), lambda i, k: (k, 0)),   # W2
                    pl.BlockSpec((1, O_pad),      lambda i, k: (0, 0)),   # b2
                ],
                out_specs=pl.BlockSpec((tm_eff, O_pad), lambda i, k: (i, 0)),
                scratch_shapes=[pltpu.VMEM((tm_eff, O_pad), jnp.float32)],
            ),
            compiler_params=pltpu.CompilerParams(
                dimension_semantics=("parallel", "arbitrary"),
                vmem_limit_bytes=vmem_limit,
            ),
        )(x2, w1p, b1p, w2p, b2p)

    return out[:M, :O].reshape(B, N, O)


def _reference(x, w1, b1, w2, b2):
    # Exact-erf GELU in f32 — matches nn.GELU() / the PyTorch module.
    h = jnp.einsum("bnc,ch->bnh", x, w1) + b1
    h = 0.5 * h * (1.0 + lax.erf(h / math.sqrt(2.0)))
    return jnp.einsum("bnh,ho->bno", h, w2) + b2


def _make_params(key, C, Hf, Of):
    k1, kb1, k2, kb2 = jax.random.split(key, 4)
    bound1 = 1.0 / math.sqrt(C)
    w1 = jax.random.uniform(k1, (C, Hf), jnp.float32, -bound1, bound1)   # fc1.weight.T
    b1 = jax.random.uniform(kb1, (Hf,), jnp.float32, -bound1, bound1)
    bound2 = 1.0 / math.sqrt(Hf)
    w2 = jax.random.uniform(k2, (Hf, Of), jnp.float32, -bound2, bound2)  # fc2.weight.T
    b2 = jax.random.uniform(kb2, (Of,), jnp.float32, -bound2, bound2)
    return w1, b1, w2, b2


if __name__ == "__main__":
    key = jax.random.PRNGKey(0)
    kx1, kp1, kx2, kp2 = jax.random.split(key, 4)

    # --- test 1: small shapes, fused single-pass path ---------------------
    B, N, C, Hf = 2, 64, 32, 64
    Of = C                                        # out_features defaults to in_features
    x = jax.random.normal(kx1, (B, N, C), dtype=jnp.float32)
    w1, b1, w2, b2 = _make_params(kp1, C, Hf, Of)

    y = mlp_pallas(x, w1, b1, w2, b2)
    jax.block_until_ready(y)
    y_ref = _reference(x, w1, b1, w2, b2)
    assert y.shape == (B, N, Of)
    err1 = float(jnp.max(jnp.abs(y - y_ref)))
    assert jnp.allclose(y, y_ref, atol=5e-2, rtol=5e-2), f"max |err| = {err1}"

    # --- test 2: larger hidden dim, streaming (accumulator) path ----------
    B2, N2, C2, Hf2 = 2, 64, 32, 256
    Of2 = C2
    x2 = jax.random.normal(kx2, (B2, N2, C2), dtype=jnp.float32)
    w1b, b1b, w2b, b2b = _make_params(kp2, C2, Hf2, Of2)

    y2 = mlp_pallas(x2, w1b, b1b, w2b, b2b, th=128)   # force hidden streaming
    jax.block_until_ready(y2)
    y2_ref = _reference(x2, w1b, b1b, w2b, b2b)
    assert y2.shape == (B2, N2, Of2)
    err2 = float(jnp.max(jnp.abs(y2 - y2_ref)))
    assert jnp.allclose(y2, y2_ref, atol=5e-2, rtol=5e-2), f"max |err| = {err2}"

    print("KERNEL_OK")
</pallas_src>

<mosaic_0001>
module attributes {stable_mosaic.version = 11 : i64} {
  func.func @_mlp_kernel_fused(%arg0: i32, %arg1: memref<128x128xbf16, #tpu.memory_space<vmem>>, %arg2: memref<128x64xbf16, #tpu.memory_space<vmem>>, %arg3: memref<1x64xf32, #tpu.memory_space<vmem>>, %arg4: memref<64x128xbf16, #tpu.memory_space<vmem>>, %arg5: memref<1x128xf32, #tpu.memory_space<vmem>>, %arg6: memref<128x128xf32, #tpu.memory_space<vmem>>) attributes {dimension_semantics = [#tpu.dimension_semantics<parallel>], iteration_bounds = array<i64: 1>, scalar_prefetch = 0 : i64, scratch_operands = 0 : i64, tpu.core_type = #tpu.core_type<tc>, window_params = [{transform_indices = @transform_0, window_bounds = array<i64: 128, 128>}, {pipeline_mode = #tpu.pipeline_mode<synchronous>, transform_indices = @transform_1, window_bounds = array<i64: 128, 64>}, {pipeline_mode = #tpu.pipeline_mode<synchronous>, transform_indices = @transform_2, window_bounds = array<i64: 1, 64>}, {pipeline_mode = #tpu.pipeline_mode<synchronous>, transform_indices = @transform_3, window_bounds = array<i64: 64, 128>}, {pipeline_mode = #tpu.pipeline_mode<synchronous>, transform_indices = @transform_4, window_bounds = array<i64: 1, 128>}, {transform_indices = @transform_5, window_bounds = array<i64: 128, 128>}]} {
    %c0 = arith.constant 0 : index
    %c0_0 = arith.constant 0 : index
    %0 = vector.load %arg1[%c0, %c0_0] : memref<128x128xbf16, #tpu.memory_space<vmem>>, vector<128x128xbf16>
    %c0_1 = arith.constant 0 : index
    %c0_2 = arith.constant 0 : index
    %1 = vector.load %arg2[%c0_1, %c0_2] : memref<128x64xbf16, #tpu.memory_space<vmem>>, vector<128x64xbf16>
    %cst = arith.constant dense<0.000000e+00> : vector<128x64xf32>
    %2 = tpu.matmul %0, %1, %cst {dimension_numbers = #tpu.dot_dimension_numbers<[1], [0], [0], [1], [0, 0, 1, 1], [], []>} : vector<128x128xbf16>, vector<128x64xbf16>, vector<128x64xf32> -> vector<128x64xf32>
    %c0_3 = arith.constant 0 : index
    %c0_4 = arith.constant 0 : index
    %3 = vector.load %arg3[%c0_3, %c0_4] : memref<1x64xf32, #tpu.memory_space<vmem>>, vector<1x64xf32>
    %4 = vector.broadcast %3 : vector<1x64xf32> to vector<128x64xf32>
    %5 = arith.addf %2, %4 : vector<128x64xf32>
    %cst_5 = arith.constant 5.000000e-01 : f32
    %6 = vector.broadcast %cst_5 : f32 to vector<128x64xf32>
    %7 = arith.mulf %6, %5 : vector<128x64xf32>
    %8 = arith.mulf %5, %5 : vector<128x64xf32>
    %9 = arith.mulf %8, %5 : vector<128x64xf32>
    %cst_6 = arith.constant 4.471500e-02 : f32
    %10 = vector.broadcast %cst_6 : f32 to vector<128x64xf32>
    %11 = arith.mulf %10, %9 : vector<128x64xf32>
    %12 = arith.addf %5, %11 : vector<128x64xf32>
    %cst_7 = arith.constant 0.797884583 : f32
    %13 = vector.broadcast %cst_7 : f32 to vector<128x64xf32>
    %14 = arith.mulf %13, %12 : vector<128x64xf32>
    %15 = math.tanh %14 : vector<128x64xf32>
    %cst_8 = arith.constant 1.000000e+00 : f32
    %16 = vector.broadcast %cst_8 : f32 to vector<128x64xf32>
    %17 = arith.addf %16, %15 : vector<128x64xf32>
    %18 = arith.mulf %7, %17 : vector<128x64xf32>
    %19 = arith.truncf %18 : vector<128x64xf32> to vector<128x64xbf16>
    %c0_9 = arith.constant 0 : index
    %c0_10 = arith.constant 0 : index
    %20 = vector.load %arg4[%c0_9, %c0_10] : memref<64x128xbf16, #tpu.memory_space<vmem>>, vector<64x128xbf16>
    %cst_11 = arith.constant dense<0.000000e+00> : vector<128x128xf32>
    %21 = tpu.matmul %19, %20, %cst_11 {dimension_numbers = #tpu.dot_dimension_numbers<[1], [0], [0], [1], [0, 0, 1, 1], [], []>} : vector<128x64xbf16>, vector<64x128xbf16>, vector<128x128xf32> -> vector<128x128xf32>
    %c0_12 = arith.constant 0 : index
    %c0_13 = arith.constant 0 : index
    %22 = vector.load %arg5[%c0_12, %c0_13] : memref<1x128xf32, #tpu.memory_space<vmem>>, vector<1x128xf32>
    %23 = vector.broadcast %22 : vector<1x128xf32> to vector<128x128xf32>
    %24 = arith.addf %21, %23 : vector<128x128xf32>
    %c0_14 = arith.constant 0 : index
    %c0_15 = arith.constant 0 : index
    %25 = vector.load %arg6[%c0_14, %c0_15] : memref<128x128xf32, #tpu.memory_space<vmem>>, vector<128x128xf32>
    tpu.vector_store %arg6[%c0_14, %c0_15], %24 {strides = array<i32>} : memref<128x128xf32, #tpu.memory_space<vmem>>, vector<128x128xf32>,
    return
  }
  func.func @transform_0(%arg0: i32) -> (i32, i32) {
    %c0_i32 = arith.constant 0 : i32
    %c0_i32_0 = arith.constant 0 : i32
    return %arg0, %c0_i32 : i32, i32
  }
  func.func @transform_1(%arg0: i32) -> (i32, i32) {
    %c0_i32 = arith.constant 0 : i32
    %c0_i32_0 = arith.constant 0 : i32
    %c0_i32_1 = arith.constant 0 : i32
    return %c0_i32, %c0_i32_0 : i32, i32
  }
  func.func @transform_2(%arg0: i32) -> (i32, i32) {
    %c0_i32 = arith.constant 0 : i32
    %c0_i32_0 = arith.constant 0 : i32
    %c0_i32_1 = arith.constant 0 : i32
    return %c0_i32, %c0_i32_0 : i32, i32
  }
  func.func @transform_3(%arg0: i32) -> (i32, i32) {
    %c0_i32 = arith.constant 0 : i32
    %c0_i32_0 = arith.constant 0 : i32
    %c0_i32_1 = arith.constant 0 : i32
    return %c0_i32, %c0_i32_0 : i32, i32
  }
  func.func @transform_4(%arg0: i32) -> (i32, i32) {
    %c0_i32 = arith.constant 0 : i32
    %c0_i32_0 = arith.constant 0 : i32
    %c0_i32_1 = arith.constant 0 : i32
    return %c0_i32, %c0_i32_0 : i32, i32
  }
  func.func @transform_5(%arg0: i32) -> (i32, i32) {
    %c0_i32 = arith.constant 0 : i32
    %c0_i32_0 = arith.constant 0 : i32
    return %arg0, %c0_i32 : i32, i32
  }
}

</mosaic_0001>

<llo_original>
// kernel: mlp_pallas.1
$region0: #{mlp_pallas.1}
  #allocation0 [shape = 'u32[]', space=smem, size = 0x4, offset = 0x4, fixed_abs, tag = 'smem constant byte address 0x4 - core index']
  #allocation1 [shape = 'u32[144,128]{1,0:T(1,128)}', space=vmem, size = 0x12000, scoped, tag = 'internal scratch']
  %s0 = inlined_call_operand.vmem [shape: bf16[128,128], index: 0, kind: input, shape index: {}]
  %s1 = inlined_call_operand.vmem [shape: bf16[128,64], index: 1, kind: input, shape index: {}]
  %s2 = inlined_call_operand.vmem [shape: f32[1,64], index: 2, kind: input, shape index: {}]
  %s3 = inlined_call_operand.vmem [shape: bf16[64,128], index: 3, kind: input, shape index: {}]
  %s4 = inlined_call_operand.vmem [shape: f32[1,128], index: 4, kind: input, shape index: {}]
  %s5 = inlined_call_operand.vmem [shape: f32[128,128], index: 5, kind: output, shape index: {}]
  %s6 = sld [smem:[#allocation0]]
  $region30: #{mlp_pallas.1} parent=0
    _
  %s8 = ssub.s32 1, %s6
  %s9 = scalar_select 0, %s8, %s6
  // Predicated region
  $region2: #{mlp_pallas.1} parent=0 // pred_check
    _
  $region3: #{mlp_pallas.1} parent=0 // pred_check_branch
    %11 = sbr.rel (0) target = $region5
  $region4: #{mlp_pallas.1} parent=0 // pred_region
    _
  $region5: #{mlp_pallas.1} parent=0 // pred_fallthru
    _
  // Predicated region
  $region6: #{mlp_pallas.1} parent=0 // pred_check
    _
  $region7: #{mlp_pallas.1} parent=0 // pred_check_branch
    %13 = sbr.rel (0) target = $region9
  $region8: #{mlp_pallas.1} parent=0 // pred_region
    _
  $region9: #{mlp_pallas.1} parent=0 // pred_fallthru
    _
  // Predicated region
  $region10: #{mlp_pallas.1} parent=0 // pred_check
    _
  $region11: #{mlp_pallas.1} parent=0 // pred_check_branch
    %15 = sbr.rel (0) target = $region13
  $region12: #{mlp_pallas.1} parent=0 // pred_region
    _
  $region13: #{mlp_pallas.1} parent=0 // pred_fallthru
    _
  // Predicated region
  $region14: #{mlp_pallas.1} parent=0 // pred_check
    _
  $region15: #{mlp_pallas.1} parent=0 // pred_check_branch
    %17 = sbr.rel (0) target = $region17
  $region16: #{mlp_pallas.1} parent=0 // pred_region
    _
  $region17: #{mlp_pallas.1} parent=0 // pred_fallthru
    _
  // Predicated region
  $region18: #{mlp_pallas.1} parent=0 // pred_check
    _
  $region19: #{mlp_pallas.1} parent=0 // pred_check_branch
    %19 = sbr.rel (0) target = $region21
  $region20: #{mlp_pallas.1} parent=0 // pred_region
    _
  $region21: #{mlp_pallas.1} parent=0 // pred_fallthru
    _
  %v21 = vld [vmem:[%s0] sm:$0xf]
  %v22 = vld [vmem:[%s0 + $0x4] sm:$0xf]
  %v23 = vld [vmem:[%s0 + $0x8] sm:$0xf]
  %v24 = vld [vmem:[%s0 + $0xc] sm:$0xf]
  %v25 = vld [vmem:[%s0 + $0x10] sm:$0xf]
  %v26 = vld [vmem:[%s0 + $0x14] sm:$0xf]
  %v27 = vld [vmem:[%s0 + $0x18] sm:$0xf]
  %v28 = vld [vmem:[%s0 + $0x1c] sm:$0xf]
  %v29 = vld [vmem:[%s0 + $0x20] sm:$0xf]
  %v30 = vld [vmem:[%s0 + $0x24] sm:$0xf]
  %v31 = vld [vmem:[%s0 + $0x28] sm:$0xf]
  %v32 = vld [vmem:[%s0 + $0x2c] sm:$0xf]
  %v33 = vld [vmem:[%s0 + $0x30] sm:$0xf]
  %v34 = vld [vmem:[%s0 + $0x34] sm:$0xf]
  %v35 = vld [vmem:[%s0 + $0x38] sm:$0xf]
  %v36 = vld [vmem:[%s0 + $0x3c] sm:$0xf]
  %v37 = vld [vmem:[%s1] sm:$0xf]
  %v38 = vld [vmem:[%s1 + $0x4] sm:$0xf]
  %v39 = vld [vmem:[%s1 + $0x8] sm:$0xf]
  %v40 = vld [vmem:[%s1 + $0xc] sm:$0xf]
  %v41 = vld [vmem:[%s1 + $0x10] sm:$0xf]
  %v42 = vld [vmem:[%s1 + $0x14] sm:$0xf]
  %v43 = vld [vmem:[%s1 + $0x18] sm:$0xf]
  %v44 = vld [vmem:[%s1 + $0x1c] sm:$0xf]
  %v45 = vld [vmem:[%s1 + $0x20] sm:$0xf]
  %v46 = vld [vmem:[%s1 + $0x24] sm:$0xf]
  %v47 = vld [vmem:[%s1 + $0x28] sm:$0xf]
  %v48 = vld [vmem:[%s1 + $0x2c] sm:$0xf]
  %v49 = vld [vmem:[%s1 + $0x30] sm:$0xf]
  %v50 = vld [vmem:[%s1 + $0x34] sm:$0xf]
  %v51 = vld [vmem:[%s1 + $0x38] sm:$0xf]
  %v52 = vld [vmem:[%s1 + $0x3c] sm:$0xf]
  %v53 = vld [vmem:[%s2] sm:$0x1]
  %v55 = vlaneseq
  %v56 = vshrl.u32 %v55, 7
  %v57 = vsub.s32 0, %v56
  %v58 = vrot.slane %v53, %v57
  %v76 = vunpack.c.l.b16 %v21
  %v77 = vunpack.c.l.b16 %v22
  %v78 = vunpack.c.l.b16 %v23
  %v79 = vunpack.c.l.b16 %v24
  %v80 = vunpack.c.l.b16 %v25
  %v81 = vunpack.c.l.b16 %v26
  %v82 = vunpack.c.l.b16 %v27
  %v83 = vunpack.c.l.b16 %v28
  %v84 = vunpack.c.l.b16 %v29
  %v85 = vunpack.c.l.b16 %v30
  %v86 = vunpack.c.l.b16 %v31
  %v87 = vunpack.c.l.b16 %v32
  %v88 = vunpack.c.l.b16 %v33
  %v89 = vunpack.c.l.b16 %v34
  %v90 = vunpack.c.l.b16 %v35
  %v91 = vunpack.c.l.b16 %v36
  %v92 = vpack.c.b16 %v77, %v76
  %v93 = vpack.c.b16 %v79, %v78
  %v94 = vpack.c.b16 %v81, %v80
  %v95 = vpack.c.b16 %v83, %v82
  %v96 = vpack.c.b16 %v85, %v84
  %v97 = vpack.c.b16 %v87, %v86
  %v98 = vpack.c.b16 %v89, %v88
  %v99 = vpack.c.b16 %v91, %v90
  %v124 = vunpack.c.l.b16 %v37
  %v125 = vunpack.c.l.b16 %v38
  %v126 = vunpack.c.l.b16 %v39
  %v127 = vunpack.c.l.b16 %v40
  %v128 = vunpack.c.l.b16 %v41
  %v129 = vunpack.c.l.b16 %v42
  %v130 = vunpack.c.l.b16 %v43
  %v131 = vunpack.c.l.b16 %v44
  %v132 = vunpack.c.l.b16 %v45
  %v133 = vunpack.c.l.b16 %v46
  %v134 = vunpack.c.l.b16 %v47
  %v135 = vunpack.c.l.b16 %v48
  %v136 = vunpack.c.l.b16 %v49
  %v137 = vunpack.c.l.b16 %v50
  %v138 = vunpack.c.l.b16 %v51
  %v139 = vunpack.c.l.b16 %v52
  %v140 = vpack.c.b16 %v125, %v124
  %v141 = vpack.c.b16 %v127, %v126
  %v142 = vpack.c.b16 %v129, %v128
  %v143 = vpack.c.b16 %v131, %v130
  %v144 = vpack.c.b16 %v133, %v132
  %v145 = vpack.c.b16 %v135, %v134
  %v146 = vpack.c.b16 %v137, %v136
  %v147 = vpack.c.b16 %v139, %v138
  %156 = vmatprep.subr.bf16.mxu0 0
  %157 = vmatpush1.bf16.msra.mxu0 %v147
  %158 = vmatprep.subr.bf16.mxu0 0
  %159 = vmatpush1.bf16.msra.mxu0 %v146
  %160 = vmatprep.subr.bf16.mxu0 0
  %161 = vmatpush1.bf16.msra.mxu0 %v145
  %162 = vmatprep.subr.bf16.mxu0 0
  %163 = vmatpush1.bf16.msra.mxu0 %v144
  %164 = vmatprep.subr.bf16.mxu0 0
  %165 = vmatpush1.bf16.msra.mxu0 %v143
  %166 = vmatprep.subr.bf16.mxu0 0
  %167 = vmatpush1.bf16.msra.mxu0 %v142
  %168 = vmatprep.subr.bf16.mxu0 0
  %169 = vmatpush1.bf16.msra.mxu0 %v141
  %170 = vmatprep.subr.bf16.mxu0 0
  %171 = vmatpush1.bf16.msra.mxu0 %v140
  %172 = vmatprep.subr.bf16.mxu0 0
  %173 = vmatpush2.bf16.msra.mxu0 0
  %174 = vmatprep.subr.bf16.mxu0 0
  %175 = vmatpush2.bf16.msra.mxu0 0
  %176 = vmatprep.subr.bf16.mxu0 0
  %177 = vmatpush2.bf16.msra.mxu0 0
  %178 = vmatprep.subr.bf16.mxu0 0
  %179 = vmatpush2.bf16.msra.mxu0 0
  %180 = vmatprep.subr.bf16.mxu0 0
  %181 = vmatpush2.bf16.msra.mxu0 0
  %182 = vmatprep.subr.bf16.mxu0 0
  %183 = vmatpush2.bf16.msra.mxu0 0
  %184 = vmatprep.subr.bf16.mxu0 0
  %185 = vmatpush2.bf16.msra.mxu0 0
  %186 = vmatprep.subr.bf16.mxu0 0
  %187 = vmatpush2.bf16.msra.mxu0 0
  %188 = vmatprep.mubr.bf16.mxu0 0
  %189 = vmatmul.mubr.bf16.gmra.mxu0 %v92
  %v190 = vpop.f32.mrf.mxu0
  %v191 = vadd.f32 %v58, %v190
  %v192 = vpop.f32.mrf.mxu0
  %v193 = vpop.f32.mrf.mxu0
  %v194 = vadd.f32 %v58, %v193
  %v195 = vpop.f32.mrf.mxu0
  %196 = vmatprep.mubr.bf16.mxu0 0
  %197 = vmatmul.mubr.bf16.gmra.mxu0 %v93
  %v198 = vpop.f32.mrf.mxu0
  %v199 = vadd.f32 %v58, %v198
  %v200 = vpop.f32.mrf.mxu0
  %v201 = vpop.f32.mrf.mxu0
  %v202 = vadd.f32 %v58, %v201
  %v203 = vpop.f32.mrf.mxu0
  %204 = vmatprep.mubr.bf16.mxu0 0
  %205 = vmatmul.mubr.bf16.gmra.mxu0 %v94
  %v206 = vpop.f32.mrf.mxu0
  %v207 = vadd.f32 %v58, %v206
  %v208 = vpop.f32.mrf.mxu0
  %v209 = vpop.f32.mrf.mxu0
  %v210 = vadd.f32 %v58, %v209
  %v211 = vpop.f32.mrf.mxu0
  %212 = vmatprep.mubr.bf16.mxu0 0
  %213 = vmatmul.mubr.bf16.gmra.mxu0 %v95
  %v214 = vpop.f32.mrf.mxu0
  %v215 = vadd.f32 %v58, %v214
  %v216 = vpop.f32.mrf.mxu0
  %v217 = vpop.f32.mrf.mxu0
  %v218 = vadd.f32 %v58, %v217
  %v219 = vpop.f32.mrf.mxu0
  %220 = vmatprep.mubr.bf16.mxu0 0
  %221 = vmatmul.mubr.bf16.gmra.mxu0 %v96
  %v222 = vpop.f32.mrf.mxu0
  %v223 = vadd.f32 %v58, %v222
  %v224 = vpop.f32.mrf.mxu0
  %v225 = vpop.f32.mrf.mxu0
  %v226 = vadd.f32 %v58, %v225
  %v227 = vpop.f32.mrf.mxu0
  %228 = vmatprep.mubr.bf16.mxu0 0
  %229 = vmatmul.mubr.bf16.gmra.mxu0 %v97
  %v230 = vpop.f32.mrf.mxu0
  %v231 = vadd.f32 %v58, %v230
  %v232 = vpop.f32.mrf.mxu0
  %v233 = vpop.f32.mrf.mxu0
  %v234 = vadd.f32 %v58, %v233
  %v235 = vpop.f32.mrf.mxu0
  %236 = vmatprep.mubr.bf16.mxu0 0
  %237 = vmatmul.mubr.bf16.gmra.mxu0 %v98
  %v238 = vpop.f32.mrf.mxu0
  %v239 = vadd.f32 %v58, %v238
  %v240 = vpop.f32.mrf.mxu0
  %v241 = vpop.f32.mrf.mxu0
  %v242 = vadd.f32 %v58, %v241
  %v243 = vpop.f32.mrf.mxu0
  %244 = vmatprep.mubr.bf16.mxu0 0
  %245 = vmatmul.mubr.bf16.gmra.mxu0 %v99
  %v246 = vpop.f32.mrf.mxu0
  %v247 = vadd.f32 %v58, %v246
  %v248 = vpop.f32.mrf.mxu0
  %v249 = vpop.f32.mrf.mxu0
  %v250 = vadd.f32 %v58, %v249
  %v251 = vpop.f32.mrf.mxu0
  %252 = vdwg.mxu0
  %v253 = vmul.f32 %v191, 0.5
  %v254 = vmul.f32 %v194, 0.5
  %v255 = vmul.f32 %v199, 0.5
  %v256 = vmul.f32 %v202, 0.5
  %v257 = vmul.f32 %v207, 0.5
  %v258 = vmul.f32 %v210, 0.5
  %v259 = vmul.f32 %v215, 0.5
  %v260 = vmul.f32 %v218, 0.5
  %v261 = vmul.f32 %v223, 0.5
  %v262 = vmul.f32 %v226, 0.5
  %v263 = vmul.f32 %v231, 0.5
  %v264 = vmul.f32 %v234, 0.5
  %v265 = vmul.f32 %v239, 0.5
  %v266 = vmul.f32 %v242, 0.5
  %v267 = vmul.f32 %v247, 0.5
  %v268 = vmul.f32 %v250, 0.5
  %v269 = vmul.f32 %v191, %v191
  %v270 = vmul.f32 %v194, %v194
  %v271 = vmul.f32 %v199, %v199
  %v272 = vmul.f32 %v202, %v202
  %v273 = vmul.f32 %v207, %v207
  %v274 = vmul.f32 %v210, %v210
  %v275 = vmul.f32 %v215, %v215
  %v276 = vmul.f32 %v218, %v218
  %v277 = vmul.f32 %v223, %v223
  %v278 = vmul.f32 %v226, %v226
  %v279 = vmul.f32 %v231, %v231
  %v280 = vmul.f32 %v234, %v234
  %v281 = vmul.f32 %v239, %v239
  %v282 = vmul.f32 %v242, %v242
  %v283 = vmul.f32 %v247, %v247
  %v284 = vmul.f32 %v250, %v250
  %v285 = vmul.f32 %v269, %v191
  %v286 = vmul.f32 %v270, %v194
  %v287 = vmul.f32 %v271, %v199
  %v288 = vmul.f32 %v272, %v202
  %v289 = vmul.f32 %v273, %v207
  %v290 = vmul.f32 %v274, %v210
  %v291 = vmul.f32 %v275, %v215
  %v292 = vmul.f32 %v276, %v218
  %v293 = vmul.f32 %v277, %v223
  %v294 = vmul.f32 %v278, %v226
  %v295 = vmul.f32 %v279, %v231
  %v296 = vmul.f32 %v280, %v234
  %v297 = vmul.f32 %v281, %v239
  %v298 = vmul.f32 %v282, %v242
  %v299 = vmul.f32 %v283, %v247
  %v300 = vmul.f32 %v284, %v250
  %v301 = vmul.f32 %v285, 0.044715
  %v302 = vmul.f32 %v286, 0.044715
  %v303 = vmul.f32 %v287, 0.044715
  %v304 = vmul.f32 %v288, 0.044715
  %v305 = vmul.f32 %v289, 0.044715
  %v306 = vmul.f32 %v290, 0.044715
  %v307 = vmul.f32 %v291, 0.044715
  %v308 = vmul.f32 %v292, 0.044715
  %v309 = vmul.f32 %v293, 0.044715
  %v310 = vmul.f32 %v294, 0.044715
  %v311 = vmul.f32 %v295, 0.044715
  %v312 = vmul.f32 %v296, 0.044715
  %v313 = vmul.f32 %v297, 0.044715
  %v314 = vmul.f32 %v298, 0.044715
  %v315 = vmul.f32 %v299, 0.044715
  %v316 = vmul.f32 %v300, 0.044715
  %v317 = vadd.f32 %v191, %v301
  %v318 = vadd.f32 %v194, %v302
  %v319 = vadd.f32 %v199, %v303
  %v320 = vadd.f32 %v202, %v304
  %v321 = vadd.f32 %v207, %v305
  %v322 = vadd.f32 %v210, %v306
  %v323 = vadd.f32 %v215, %v307
  %v324 = vadd.f32 %v218, %v308
  %v325 = vadd.f32 %v223, %v309
  %v326 = vadd.f32 %v226, %v310
  %v327 = vadd.f32 %v231, %v311
  %v328 = vadd.f32 %v234, %v312
  %v329 = vadd.f32 %v239, %v313
  %v330 = vadd.f32 %v242, %v314
  %v331 = vadd.f32 %v247, %v315
  %v332 = vadd.f32 %v250, %v316
  %v333 = vmul.f32 %v317, 0.7978846
  %v334 = vmul.f32 %v318, 0.7978846
  %v335 = vmul.f32 %v319, 0.7978846
  %v336 = vmul.f32 %v320, 0.7978846
  %v337 = vmul.f32 %v321, 0.7978846
  %v338 = vmul.f32 %v322, 0.7978846
  %v339 = vmul.f32 %v323, 0.7978846
  %v340 = vmul.f32 %v324, 0.7978846
  %v341 = vmul.f32 %v325, 0.7978846
  %v342 = vmul.f32 %v326, 0.7978846
  %v343 = vmul.f32 %v327, 0.7978846
  %v344 = vmul.f32 %v328, 0.7978846
  %v345 = vmul.f32 %v329, 0.7978846
  %v346 = vmul.f32 %v330, 0.7978846
  %v347 = vmul.f32 %v331, 0.7978846
  %v348 = vmul.f32 %v332, 0.7978846
  %v349 = vtanh.pop %v333
  %v350 = vtanh.pop %v334
  %v351 = vtanh.pop %v335
  %v352 = vtanh.pop %v336
  %v353 = vtanh.pop %v337
  %v354 = vtanh.pop %v338
  %v355 = vtanh.pop %v339
  %v356 = vtanh.pop %v340
  %v357 = vtanh.pop %v341
  %v358 = vtanh.pop %v342
  %v359 = vtanh.pop %v343
  %v360 = vtanh.pop %v344
  %v361 = vtanh.pop %v345
  %v362 = vtanh.pop %v346
  %v363 = vtanh.pop %v347
  %v364 = vtanh.pop %v348
  %v365 = vadd.f32 %v349, 1.0
  %v366 = vadd.f32 %v350, 1.0
  %v367 = vadd.f32 %v351, 1.0
  %v368 = vadd.f32 %v352, 1.0
  %v369 = vadd.f32 %v353, 1.0
  %v370 = vadd.f32 %v354, 1.0
  %v371 = vadd.f32 %v355, 1.0
  %v372 = vadd.f32 %v356, 1.0
  %v373 = vadd.f32 %v357, 1.0
  %v374 = vadd.f32 %v358, 1.0
  %v375 = vadd.f32 %v359, 1.0
  %v376 = vadd.f32 %v360, 1.0
  %v377 = vadd.f32 %v361, 1.0
  %v378 = vadd.f32 %v362, 1.0
  %v379 = vadd.f32 %v363, 1.0
  %v380 = vadd.f32 %v364, 1.0
  %v381 = vmul.f32 %v253, %v365
  %v382 = vmul.f32 %v254, %v366
  %v383 = vmul.f32 %v255, %v367
  %v384 = vmul.f32 %v256, %v368
  %v385 = vmul.f32 %v257, %v369
  %v386 = vmul.f32 %v258, %v370
  %v387 = vmul.f32 %v259, %v371
  %v388 = vmul.f32 %v260, %v372
  %v389 = vmul.f32 %v261, %v373
  %v390 = vmul.f32 %v262, %v374
  %v391 = vmul.f32 %v263, %v375
  %v392 = vmul.f32 %v264, %v376
  %v393 = vmul.f32 %v265, %v377
  %v394 = vmul.f32 %v266, %v378
  %v395 = vmul.f32 %v267, %v379
  %v396 = vmul.f32 %v268, %v380
  %v397 = vpack.c.bf16 %v382, %v381
  %v398 = vpack.c.bf16 %v384, %v383
  %v399 = vpack.c.bf16 %v386, %v385
  %v400 = vpack.c.bf16 %v388, %v387
  %v401 = vpack.c.bf16 %v390, %v389
  %v402 = vpack.c.bf16 %v392, %v391
  %v403 = vpack.c.bf16 %v394, %v393
  %v404 = vpack.c.bf16 %v396, %v395
  %v405 = vld [vmem:[%s3] sm:$0xf]
  %v406 = vld [vmem:[%s3 + $0x4] sm:$0xf]
  %v407 = vld [vmem:[%s3 + $0x8] sm:$0xf]
  %v408 = vld [vmem:[%s3 + $0xc] sm:$0xf]
  %v409 = vld [vmem:[%s3 + $0x10] sm:$0xf]
  %v410 = vld [vmem:[%s3 + $0x14] sm:$0xf]
  %v411 = vld [vmem:[%s3 + $0x18] sm:$0xf]
  %v412 = vld [vmem:[%s3 + $0x1c] sm:$0xf]
  %v413 = vld [vmem:[%s4] sm:$0x1]
  %v415 = vlaneseq
  %v416 = vshrl.u32 %v415, 7
  %v417 = vsub.s32 0, %v416
  %v418 = vrot.slane %v413, %v417
  %v428 = vunpack.c.l.b16 %v405
  %v429 = vunpack.c.l.b16 %v406
  %v430 = vunpack.c.l.b16 %v407
  %v431 = vunpack.c.l.b16 %v408
  %v432 = vunpack.c.l.b16 %v409
  %v433 = vunpack.c.l.b16 %v410
  %v434 = vunpack.c.l.b16 %v411
  %v435 = vunpack.c.l.b16 %v412
  %v436 = vpack.c.b16 %v429, %v428
  %v437 = vpack.c.b16 %v431, %v430
  %v438 = vpack.c.b16 %v433, %v432
  %v439 = vpack.c.b16 %v435, %v434
  %vm444 = vcmask 523264
  %v446 = vsel %vm444, %v397, 0
  %v449 = vsel %vm444, %v398, 0
  %v452 = vsel %vm444, %v399, 0
  %v455 = vsel %vm444, %v400, 0
  %v458 = vsel %vm444, %v401, 0
  %v461 = vsel %vm444, %v402, 0
  %v464 = vsel %vm444, %v403, 0
  %v467 = vsel %vm444, %v404, 0
  %469 = vmatprep.subr.bf16.mxu0 0
  %470 = vmatpush1.bf16.msra.mxu0 0
  %471 = vmatprep.subr.bf16.mxu0 0
  %472 = vmatpush1.bf16.msra.mxu0 0
  %473 = vmatprep.subr.bf16.mxu0 0
  %474 = vmatpush1.bf16.msra.mxu0 0
  %475 = vmatprep.subr.bf16.mxu0 0
  %476 = vmatpush1.bf16.msra.mxu0 0
  %477 = vmatprep.subr.bf16.mxu0 0
  %478 = vmatpush1.bf16.msra.mxu0 %v439
  %479 = vmatprep.subr.bf16.mxu0 0
  %480 = vmatpush1.bf16.msra.mxu0 %v438
  %481 = vmatprep.subr.bf16.mxu0 0
  %482 = vmatpush1.bf16.msra.mxu0 %v437
  %483 = vmatprep.subr.bf16.mxu0 0
  %484 = vmatpush1.bf16.msra.mxu0 %v436
  %485 = vmatprep.subr.bf16.mxu0 0
  %486 = vmatpush2.bf16.msra.mxu0 0
  %487 = vmatprep.subr.bf16.mxu0 0
  %488 = vmatpush2.bf16.msra.mxu0 0
  %489 = vmatprep.subr.bf16.mxu0 0
  %490 = vmatpush2.bf16.msra.mxu0 0
  %491 = vmatprep.subr.bf16.mxu0 0
  %492 = vmatpush2.bf16.msra.mxu0 0
  %493 = vmatprep.subr.bf16.mxu0 0
  %494 = vmatpush2.bf16.msra.mxu0 0
  %495 = vmatprep.subr.bf16.mxu0 0
  %496 = vmatpush2.bf16.msra.mxu0 0
  %497 = vmatprep.subr.bf16.mxu0 0
  %498 = vmatpush2.bf16.msra.mxu0 0
  %499 = vmatprep.subr.bf16.mxu0 0
  %500 = vmatpush2.bf16.msra.mxu0 0
  %501 = vmatprep.mubr.bf16.mxu0 0
  %502 = vmatmul.mubr.bf16.gmra.mxu0 %v446
  %v503 = vpop.f32.mrf.mxu0
  %v504 = vadd.f32 %v418, %v503
  %v505 = vpop.f32.mrf.mxu0
  %v506 = vpop.f32.mrf.mxu0
  %v507 = vadd.f32 %v418, %v506
  %v508 = vpop.f32.mrf.mxu0
  %509 = vmatprep.mubr.bf16.mxu0 0
  %510 = vmatmul.mubr.bf16.gmra.mxu0 %v449
  %v511 = vpop.f32.mrf.mxu0
  %v512 = vadd.f32 %v418, %v511
  %v513 = vpop.f32.mrf.mxu0
  %v514 = vpop.f32.mrf.mxu0
  %v515 = vadd.f32 %v418, %v514
  %v516 = vpop.f32.mrf.mxu0
  %517 = vmatprep.mubr.bf16.mxu0 0
  %518 = vmatmul.mubr.bf16.gmra.mxu0 %v452
  %v519 = vpop.f32.mrf.mxu0
  %v520 = vadd.f32 %v418, %v519
  %v521 = vpop.f32.mrf.mxu0
  %v522 = vpop.f32.mrf.mxu0
  %v523 = vadd.f32 %v418, %v522
  %v524 = vpop.f32.mrf.mxu0
  %525 = vmatprep.mubr.bf16.mxu0 0
  %526 = vmatmul.mubr.bf16.gmra.mxu0 %v455
  %v527 = vpop.f32.mrf.mxu0
  %v528 = vadd.f32 %v418, %v527
  %v529 = vpop.f32.mrf.mxu0
  %v530 = vpop.f32.mrf.mxu0
  %v531 = vadd.f32 %v418, %v530
  %v532 = vpop.f32.mrf.mxu0
  %533 = vmatprep.mubr.bf16.mxu0 0
  %534 = vmatmul.mubr.bf16.gmra.mxu0 %v458
  %v535 = vpop.f32.mrf.mxu0
  %v536 = vadd.f32 %v418, %v535
  %v537 = vpop.f32.mrf.mxu0
  %v538 = vpop.f32.mrf.mxu0
  %v539 = vadd.f32 %v418, %v538
  %v540 = vpop.f32.mrf.mxu0
  %541 = vmatprep.mubr.bf16.mxu0 0
  %542 = vmatmul.mubr.bf16.gmra.mxu0 %v461
  %v543 = vpop.f32.mrf.mxu0
  %v544 = vadd.f32 %v418, %v543
  %v545 = vpop.f32.mrf.mxu0
  %v546 = vpop.f32.mrf.mxu0
  %v547 = vadd.f32 %v418, %v546
  %v548 = vpop.f32.mrf.mxu0
  %549 = vmatprep.mubr.bf16.mxu0 0
  %550 = vmatmul.mubr.bf16.gmra.mxu0 %v464
  %v551 = vpop.f32.mrf.mxu0
  %v552 = vadd.f32 %v418, %v551
  %v553 = vpop.f32.mrf.mxu0
  %v554 = vpop.f32.mrf.mxu0
  %v555 = vadd.f32 %v418, %v554
  %v556 = vpop.f32.mrf.mxu0
  %557 = vmatprep.mubr.bf16.mxu0 0
  %558 = vmatmul.mubr.bf16.gmra.mxu0 %v467
  %v559 = vpop.f32.mrf.mxu0
  %v560 = vadd.f32 %v418, %v559
  %v561 = vpop.f32.mrf.mxu0
  %v562 = vpop.f32.mrf.mxu0
  %v563 = vadd.f32 %v418, %v562
  %v564 = vpop.f32.mrf.mxu0
  %565 = vdwg.mxu0
  %566 = vst [vmem:[%s5] sm:$0xff] %v504
  %567 = vst [vmem:[%s5 + $0x8] sm:$0xff] %v507
  %568 = vst [vmem:[%s5 + $0x10] sm:$0xff] %v512
  %569 = vst [vmem:[%s5 + $0x18] sm:$0xff] %v515
  %570 = vst [vmem:[%s5 + $0x20] sm:$0xff] %v520
  %571 = vst [vmem:[%s5 + $0x28] sm:$0xff] %v523
  %572 = vst [vmem:[%s5 + $0x30] sm:$0xff] %v528
  %573 = vst [vmem:[%s5 + $0x38] sm:$0xff] %v531
  %574 = vst [vmem:[%s5 + $0x40] sm:$0xff] %v536
  %575 = vst [vmem:[%s5 + $0x48] sm:$0xff] %v539
  %576 = vst [vmem:[%s5 + $0x50] sm:$0xff] %v544
  %577 = vst [vmem:[%s5 + $0x58] sm:$0xff] %v547
  %578 = vst [vmem:[%s5 + $0x60] sm:$0xff] %v552
  %579 = vst [vmem:[%s5 + $0x68] sm:$0xff] %v555
  %580 = vst [vmem:[%s5 + $0x70] sm:$0xff] %v560
  %581 = vst [vmem:[%s5 + $0x78] sm:$0xff] %v563
  // Predicated region
  $region22: #{mlp_pallas.1} parent=0 // pred_check
    _
  $region23: #{mlp_pallas.1} parent=0 // pred_check_branch
    %583 = sbr.rel (0) target = $region25
  $region24: #{mlp_pallas.1} parent=0 // pred_region
    _
  $region25: #{mlp_pallas.1} parent=0 // pred_fallthru
    _
  // Predicated region
  $region26: #{mlp_pallas.1} parent=0 // pred_check
    _
  $region27: #{mlp_pallas.1} parent=0 // pred_check_branch
    %585 = sbr.rel (0) target = $region29
  $region28: #{mlp_pallas.1} parent=0 // pred_region
    _
  $region29: #{mlp_pallas.1} parent=0 // pred_fallthru
    _

</llo_original>
